<compile_context>
chip_gen: v7x
topology: tpu7x:2x2x1
jax: 0.10.0
libtpu: 0.0.40
codegen_flags: <defaults>
</compile_context>

<pallas_src>
import inspect

import jax
import jax.numpy as jnp
from jax.experimental import pallas as pl
from jax.experimental.pallas import tpu as pltpu

LN_EPS = 1e-5  # nn.LayerNorm default eps


def _round_up(v: int, m: int) -> int:
    return ((v + m - 1) // m) * m


def _sublane_pack(dtype) -> int:
    # Rows per packed sublane group: 8 for f32, 16 for bf16, 32 for int8/fp8.
    return max(8, 32 // jnp.dtype(dtype).itemsize)


def _supports_single_buffer() -> bool:
    # Feature check instead of try/except-around-execution (single trace/compile).
    if not hasattr(pl, "Buffered"):
        return False
    try:
        return "pipeline_mode" in inspect.signature(pl.BlockSpec).parameters
    except (TypeError, ValueError):
        return False


def _vmem_capacity_bytes() -> int:
    try:
        cap = getattr(pltpu.get_tpu_info(), "vmem_capacity_bytes", None)
        if cap:
            return int(cap)
    except Exception:
        pass
    return 64 * 1024 * 1024  # conservative fallback (v7x physical VMEM)


def final_layer_kernel(x_ref, gamma_ref, beta_ref, w_ref, b_ref, o_ref, y_ref):
    # x_ref:     (tm, H)    rows of the flattened input
    # gamma/beta:(1, H)     LayerNorm affine params
    # w_ref:     (H, tn)    Linear weight tile, pre-transposed (contraction sublane-major)
    # b_ref:     (1, tn)    Linear bias tile
    # o_ref:     (tm, tn)   output tile
    # y_ref:     (tm, H)    VMEM scratch: normalized rows cached across the j axis

    # Compute LayerNorm only on the first output-column step; the x block index
    # does not change with j, so for j > 0 we reuse the cached normalized rows.
    @pl.when(pl.program_id(1) == 0)
    def _():
        x = x_ref[...].astype(jnp.float32)
        inv_h = 1.0 / x.shape[-1]
        mean = jnp.sum(x, axis=-1, keepdims=True) * inv_h
        xc = x - mean
        var = jnp.sum(xc * xc, axis=-1, keepdims=True) * inv_h  # centered two-pass form
        inv_std = jax.lax.rsqrt(var + LN_EPS)
        y = xc * inv_std * gamma_ref[...].astype(jnp.float32)
        y = y + beta_ref[...].astype(jnp.float32)
        y_ref[...] = y.astype(y_ref.dtype)

    # MXU matmul: LHS in the weight's storage dtype (bf16-native when weights are
    # bf16), f32 accumulation.
    out = jnp.dot(y_ref[...], w_ref[...], preferred_element_type=jnp.float32)
    out = out + b_ref[...].astype(jnp.float32)
    o_ref[...] = out.astype(o_ref.dtype)


def final_layer(x, gamma, beta, weight, bias, *, tm=512, tn=512):
    """x: (B, S, H); gamma/beta: (H,); weight: (O, H); bias: (O,)."""
    B, S, H = x.shape
    O = weight.shape[0]
    M = B * S

    # ---- tile selection -----------------------------------------------------
    pack = _sublane_pack(x.dtype)
    tm_eff = _round_up(min(tm, _round_up(M, pack)), pack)

    # Output dim: pad to a lane-dense multiple of 128; tn must divide O_pad so we
    # never pad the weight beyond the 128-multiple (no ragged column blocks).
    O_pad = _round_up(O, 128)
    tn_cap = max(128, min(tn, O_pad) - (min(tn, O_pad) % 128))
    tn_eff = 128
    t = tn_cap
    while t >= 128:
        if O_pad % t == 0:
            tn_eff = t
            break
        t -= 128

    single_buf = _supports_single_buffer()

    x_item = jnp.dtype(x.dtype).itemsize
    w_item = jnp.dtype(weight.dtype).itemsize
    o_item = x_item

    def estimate(tm_, tn_):
        ncol = O_pad // tn_
        w_bufs = 1 if (single_buf and ncol == 1) else 2
        est = 2 * tm_ * H * x_item          # x tile (double-buffered)
        est += 2 * tm_ * tn_ * o_item       # out tile (double-buffered)
        est += w_bufs * H * tn_ * w_item    # weight tile
        est += tm_ * H * w_item             # normalized-row scratch
        est += 3 * tm_ * H * 4              # f32 LN temporaries (x, centered, y)
        est += tm_ * tn_ * 4                # f32 matmul accumulator
        est += 4 * H * 4 + 4 * tn_ * 4      # gamma / beta / bias
        return est

    vmem_cap = _vmem_capacity_bytes()
    budget = max(24 * 1024 * 1024, int(0.80 * vmem_cap))  # leave compiler headroom

    # Shrink tiles (rows first, then columns) until the estimate fits the budget.
    while estimate(tm_eff, tn_eff) > budget:
        if tm_eff > 2 * pack:
            tm_eff = max(_round_up(tm_eff // 2, pack), pack)
            continue
        if tn_eff > 128:
            t = tn_eff - 128
            while t > 128 and O_pad % t != 0:
                t -= 128
            tn_eff = t
            continue
        break

    n_row = pl.cdiv(M, tm_eff)      # ragged last block handled by Pallas (masked store)
    n_col = O_pad // tn_eff
    est = estimate(tm_eff, tn_eff)
    vmem_limit = int(min(budget, max(32 * 1024 * 1024, int(1.25 * est))))

    # ---- one-time parameter layout fix-ups (single pass over W, amortized) ---
    # Pre-transpose W to (H, O_pad): contraction dim sublane-major for the MXU
    # RHS, so no per-grid-step XLU relayout of the weight tile.
    # TODO(synk): if model precision allows, cast f32 weights to bf16 here for the
    # bf16-native MXU path (largest win on v5e); kept in storage dtype for parity.
    w_t = weight.T  # (H, O)
    if O_pad != O:
        w_t = jnp.pad(w_t, ((0, 0), (0, O_pad - O)))
        b_p = jnp.pad(bias, ((0, O_pad - O),))
    else:
        b_p = bias

    x2 = x.reshape(M, H)
    gamma2 = gamma.reshape(1, H)
    beta2 = beta.reshape(1, H)
    b2 = b_p.reshape(1, O_pad)

    # ---- BlockSpecs -----------------------------------------------------------
    def invariant_spec(shape, index_map):
        # Constant block index -> no re-DMA; Buffered(1) halves resident VMEM.
        if single_buf:
            return pl.BlockSpec(shape, index_map, pipeline_mode=pl.Buffered(1))
        return pl.BlockSpec(shape, index_map)

    w_spec_fn = invariant_spec if n_col == 1 else pl.BlockSpec

    in_specs = [
        pl.BlockSpec((tm_eff, H), lambda i, j: (i, 0)),        # x rows
        invariant_spec((1, H), lambda i, j: (0, 0)),           # gamma
        invariant_spec((1, H), lambda i, j: (0, 0)),           # beta
        w_spec_fn((H, tn_eff), lambda i, j: (0, j)),           # W (H, O_pad)
        w_spec_fn((1, tn_eff), lambda i, j: (0, j)),           # bias
    ]
    out_spec = pl.BlockSpec((tm_eff, tn_eff), lambda i, j: (i, j))

    call = pl.pallas_call(
        final_layer_kernel,
        out_shape=jax.ShapeDtypeStruct((M, O_pad), x.dtype),
        grid_spec=pltpu.PrefetchScalarGridSpec(
            num_scalar_prefetch=0,
            grid=(n_row, n_col),
            in_specs=in_specs,
            out_specs=out_spec,
            scratch_shapes=[pltpu.VMEM((tm_eff, H), weight.dtype)],
        ),
        compiler_params=pltpu.CompilerParams(
            # Rows are independent ("parallel", megacore-shardable); the output
            # column axis is "arbitrary" so the LN cache is valid (j iterates
            # innermost per row tile on one core).
            dimension_semantics=("parallel", "arbitrary"),
            vmem_limit_bytes=vmem_limit,
        ),
    )

    out = call(x2, gamma2, beta2, w_t, b2)
    # NOTE: keep this slice/reshape inside the caller's jit so XLA can fuse/elide
    # the copy of the lane-padded output.
    if O_pad != O:
        out = out[:, :O]
    return out.reshape(B, S, O)


def reference(x, gamma, beta, weight, bias):
    xf = x.astype(jnp.float32)
    mean = jnp.mean(xf, axis=-1, keepdims=True)
    var = jnp.mean((xf - mean) ** 2, axis=-1, keepdims=True)
    xn = (xf - mean) / jnp.sqrt(var + LN_EPS)
    y = xn * gamma.astype(jnp.float32) + beta.astype(jnp.float32)
    out = y @ weight.T.astype(jnp.float32) + bias.astype(jnp.float32)
    return out.astype(x.dtype)


if __name__ == "__main__":
    # Small shapes consistent with the module: batch=2, seq=8, hidden=32, out=16
    B, S, H, O = 2, 8, 32, 16

    key = jax.random.PRNGKey(0)
    kx, kw, kb, kg, kbeta = jax.random.split(key, 5)

    x = jax.random.normal(kx, (B, S, H), dtype=jnp.float32)

    # Deterministic synthetic parameters (shapes follow nn.LayerNorm / nn.Linear)
    gamma = 1.0 + 0.01 * jax.random.normal(kg, (H,), dtype=jnp.float32)      # ln.weight
    beta = 0.01 * jax.random.normal(kbeta, (H,), dtype=jnp.float32)          # ln.bias
    weight = jax.random.normal(kw, (O, H), dtype=jnp.float32) / jnp.sqrt(H)  # mlp.weight
    bias = 0.01 * jax.random.normal(kb, (O,), dtype=jnp.float32)             # mlp.bias

    out = final_layer(x, gamma, beta, weight, bias)
    out = jax.block_until_ready(out)

    ref = reference(x, gamma, beta, weight, bias)
    assert out.shape == (B, S, O)
    assert jnp.allclose(out, ref, atol=1e-4, rtol=1e-4), "mismatch vs reference"

    print("KERNEL_OK")
</pallas_src>

<mosaic_0001>
module attributes {stable_mosaic.version = 11 : i64} {
  func.func @final_layer_kernel(%arg0: i32, %arg1: i32, %arg2: memref<16x32xf32, #tpu.memory_space<vmem>>, %arg3: memref<1x32xf32, #tpu.memory_space<vmem>>, %arg4: memref<1x32xf32, #tpu.memory_space<vmem>>, %arg5: memref<32x128xf32, #tpu.memory_space<vmem>>, %arg6: memref<1x128xf32, #tpu.memory_space<vmem>>, %arg7: memref<16x128xf32, #tpu.memory_space<vmem>>, %arg8: memref<16x32xf32, #tpu.memory_space<vmem>>) attributes {dimension_semantics = [#tpu.dimension_semantics<parallel>, #tpu.dimension_semantics<arbitrary>], iteration_bounds = array<i64: 1, 1>, scalar_prefetch = 0 : i64, scratch_operands = 1 : i64, tpu.core_type = #tpu.core_type<tc>, window_params = [{transform_indices = @transform_0, window_bounds = array<i64: 16, 32>}, {pipeline_mode = #tpu.pipeline_mode<synchronous>, transform_indices = @transform_1, window_bounds = array<i64: 1, 32>}, {pipeline_mode = #tpu.pipeline_mode<synchronous>, transform_indices = @transform_2, window_bounds = array<i64: 1, 32>}, {pipeline_mode = #tpu.pipeline_mode<synchronous>, transform_indices = @transform_3, window_bounds = array<i64: 32, 128>}, {pipeline_mode = #tpu.pipeline_mode<synchronous>, transform_indices = @transform_4, window_bounds = array<i64: 1, 128>}, {transform_indices = @transform_5, window_bounds = array<i64: 16, 128>}]} {
    %c0_i32 = arith.constant 0 : i32
    %0 = arith.cmpi eq, %arg1, %c0_i32 : i32
    %1 = arith.extui %0 : i1 to i32
    %c0_i32_0 = arith.constant 0 : i32
    %2 = arith.cmpi ne, %1, %c0_i32_0 : i32
    scf.if %2 {
      %c0_8 = arith.constant 0 : index
      %c0_9 = arith.constant 0 : index
      %10 = vector.load %arg2[%c0_8, %c0_9] : memref<16x32xf32, #tpu.memory_space<vmem>>, vector<16x32xf32>
      %cst_10 = arith.constant dense<0.000000e+00> : vector<16xf32>
      %11 = vector.multi_reduction <add>, %10, %cst_10 [1] : vector<16x32xf32> to vector<16xf32>
      %12 = vector.shape_cast %11 : vector<16xf32> to vector<16x1xf32>
      %cst_11 = arith.constant 3.125000e-02 : f32
      %13 = vector.broadcast %cst_11 : f32 to vector<16x1xf32>
      %14 = arith.mulf %12, %13 : vector<16x1xf32>
      %15 = vector.broadcast %14 : vector<16x1xf32> to vector<16x32xf32>
      %16 = arith.subf %10, %15 : vector<16x32xf32>
      %17 = arith.mulf %16, %16 : vector<16x32xf32>
      %cst_12 = arith.constant dense<0.000000e+00> : vector<16xf32>
      %18 = vector.multi_reduction <add>, %17, %cst_12 [1] : vector<16x32xf32> to vector<16xf32>
      %19 = vector.shape_cast %18 : vector<16xf32> to vector<16x1xf32>
      %cst_13 = arith.constant 3.125000e-02 : f32
      %20 = vector.broadcast %cst_13 : f32 to vector<16x1xf32>
      %21 = arith.mulf %19, %20 : vector<16x1xf32>
      %cst_14 = arith.constant 9.99999974E-6 : f32
      %22 = vector.broadcast %cst_14 : f32 to vector<16x1xf32>
      %23 = arith.addf %21, %22 : vector<16x1xf32>
      %24 = math.rsqrt %23 : vector<16x1xf32>
      %25 = vector.broadcast %24 : vector<16x1xf32> to vector<16x32xf32>
      %26 = arith.mulf %16, %25 : vector<16x32xf32>
      %c0_15 = arith.constant 0 : index
      %c0_16 = arith.constant 0 : index
      %27 = vector.load %arg3[%c0_15, %c0_16] : memref<1x32xf32, #tpu.memory_space<vmem>>, vector<1x32xf32>
      %28 = vector.broadcast %27 : vector<1x32xf32> to vector<16x32xf32>
      %29 = arith.mulf %26, %28 : vector<16x32xf32>
      %c0_17 = arith.constant 0 : index
      %c0_18 = arith.constant 0 : index
      %30 = vector.load %arg4[%c0_17, %c0_18] : memref<1x32xf32, #tpu.memory_space<vmem>>, vector<1x32xf32>
      %31 = vector.broadcast %30 : vector<1x32xf32> to vector<16x32xf32>
      %32 = arith.addf %29, %31 : vector<16x32xf32>
      %c0_19 = arith.constant 0 : index
      %c0_20 = arith.constant 0 : index
      %33 = vector.load %arg8[%c0_19, %c0_20] : memref<16x32xf32, #tpu.memory_space<vmem>>, vector<16x32xf32>
      tpu.vector_store %arg8[%c0_19, %c0_20], %32 {strides = array<i32>} : memref<16x32xf32, #tpu.memory_space<vmem>>, vector<16x32xf32>,
    } else {
    }
    %c0 = arith.constant 0 : index
    %c0_1 = arith.constant 0 : index
    %3 = vector.load %arg8[%c0, %c0_1] : memref<16x32xf32, #tpu.memory_space<vmem>>, vector<16x32xf32>
    %c0_2 = arith.constant 0 : index
    %c0_3 = arith.constant 0 : index
    %4 = vector.load %arg5[%c0_2, %c0_3] : memref<32x128xf32, #tpu.memory_space<vmem>>, vector<32x128xf32>
    %cst = arith.constant dense<0.000000e+00> : vector<16x128xf32>
    %5 = tpu.matmul %3, %4, %cst {dimension_numbers = #tpu.dot_dimension_numbers<[1], [0], [0], [1], [0, 0, 1, 1], [], []>} : vector<16x32xf32>, vector<32x128xf32>, vector<16x128xf32> -> vector<16x128xf32>
    %c0_4 = arith.constant 0 : index
    %c0_5 = arith.constant 0 : index
    %6 = vector.load %arg6[%c0_4, %c0_5] : memref<1x128xf32, #tpu.memory_space<vmem>>, vector<1x128xf32>
    %7 = vector.broadcast %6 : vector<1x128xf32> to vector<16x128xf32>
    %8 = arith.addf %5, %7 : vector<16x128xf32>
    %c0_6 = arith.constant 0 : index
    %c0_7 = arith.constant 0 : index
    %9 = vector.load %arg7[%c0_6, %c0_7] : memref<16x128xf32, #tpu.memory_space<vmem>>, vector<16x128xf32>
    tpu.vector_store %arg7[%c0_6, %c0_7], %8 {strides = array<i32>} : memref<16x128xf32, #tpu.memory_space<vmem>>, vector<16x128xf32>,
    return
  }
  func.func @transform_0(%arg0: i32, %arg1: i32) -> (i32, i32) {
    %c0_i32 = arith.constant 0 : i32
    %c0_i32_0 = arith.constant 0 : i32
    return %arg0, %c0_i32 : i32, i32
  }
  func.func @transform_1(%arg0: i32, %arg1: i32) -> (i32, i32) {
    %c0_i32 = arith.constant 0 : i32
    %c0_i32_0 = arith.constant 0 : i32
    %c0_i32_1 = arith.constant 0 : i32
    return %c0_i32, %c0_i32_0 : i32, i32
  }
  func.func @transform_2(%arg0: i32, %arg1: i32) -> (i32, i32) {
    %c0_i32 = arith.constant 0 : i32
    %c0_i32_0 = arith.constant 0 : i32
    %c0_i32_1 = arith.constant 0 : i32
    return %c0_i32, %c0_i32_0 : i32, i32
  }
  func.func @transform_3(%arg0: i32, %arg1: i32) -> (i32, i32) {
    %c0_i32 = arith.constant 0 : i32
    %c0_i32_0 = arith.constant 0 : i32
    return %c0_i32, %arg1 : i32, i32
  }
  func.func @transform_4(%arg0: i32, %arg1: i32) -> (i32, i32) {
    %c0_i32 = arith.constant 0 : i32
    %c0_i32_0 = arith.constant 0 : i32
    return %c0_i32, %arg1 : i32, i32
  }
  func.func @transform_5(%arg0: i32, %arg1: i32) -> (i32, i32) {
    %c0_i32 = arith.constant 0 : i32
    return %arg0, %arg1 : i32, i32
  }
}

</mosaic_0001>

<llo_original>
// kernel: tpu_custom_call.1
$region0: #{tpu_custom_call.1}
  #allocation0 [shape = 'u32[]', space=smem, size = 0x4, offset = 0x4, fixed_abs, tag = 'smem constant byte address 0x4 - core index']
  #allocation1 [shape = 'u32[144,128]{1,0:T(1,128)}', space=vmem, size = 0x12000, scoped, tag = 'internal scratch']
  #allocation2 [shape = 'f32[16,32]{1,0:T(8,128)}', space=vmem, size = 0x2000, scoped, tag = 'scratch operand']
  %s0 = inlined_call_operand.hbm [shape: f32[16,32], index: 0, kind: input, shape index: {}]
  %s1 = inlined_call_operand.vmem [shape: f32[1,32], index: 1, kind: input, shape index: {}]
  %s2 = inlined_call_operand.vmem [shape: f32[1,32], index: 2, kind: input, shape index: {}]
  %s3 = inlined_call_operand.hbm [shape: f32[32,128], index: 3, kind: input, shape index: {}]
  %s4 = inlined_call_operand.vmem [shape: f32[1,128], index: 4, kind: input, shape index: {}]
  %s5 = inlined_call_operand.hbm [shape: f32[16,128], index: 5, kind: output, shape index: {}]
  %s6 = sld [smem:[#allocation0]]
  $region42: #{tpu_custom_call.1} parent=0
    _
  %s8 = ssub.s32 1, %s6
  %s9 = scalar_select 0, %s8, %s6
  $region1: #{tpu_custom_call.1} parent=0
    #allocation3 [shape = 'u8[8192]{0}', space=vmem, size = 0x2000, scoped, tag = 'input window, operand 0, single buffered']
    #allocation4 [shape = 's32[1]{0}', space=sflag, size = 0x4, scoped, tag = 'scoped memory for tpu_custom_call.1']
    #allocation5 [shape = 's32[1]{0}', space=sflag, size = 0x4, scoped, tag = 'scoped memory for tpu_custom_call.1']
    #allocation6 [shape = 'u8[16384]{0}', space=vmem, size = 0x4000, scoped, tag = 'input window, operand 3, single buffered']
    #allocation7 [shape = 's32[1]{0}', space=sflag, size = 0x4, scoped, tag = 'scoped memory for tpu_custom_call.1']
    #allocation8 [shape = 'u8[8192]{0}', space=vmem, size = 0x2000, scoped, tag = 'output window, operand 0, single buffered']
    %10 = vsyncpa [#allocation4], 0
    %11 = vsyncpa [#allocation7], 0
    %12 = vsyncpa [#allocation5], 0
    // Predicated region
    $region2: #{tpu_custom_call.1} parent=1 // pred_check
      _
    $region3: #{tpu_custom_call.1} parent=1 // pred_check_branch
      %14 = sbr.rel (0) target = $region5
    $region4: #{tpu_custom_call.1} parent=1 // pred_region
      %s16 = ssub.s32 256, 256
      %17 = vsyncadd [#allocation4], %s16
      %s18 = sshll.u32 [#allocation3], 4
      %s19 = int_to_ptr.vmem [resolvable:$true] %s18
      %24 = dma.hbm_to_vmem [thread:$0]  %s0, 256, %s19, [#allocation4], 128, 128, 8
    $region5: #{tpu_custom_call.1} parent=1 // pred_fallthru
      _
    // Predicated region
    $region6: #{tpu_custom_call.1} parent=1 // pred_check
      _
    $region7: #{tpu_custom_call.1} parent=1 // pred_check_branch
      %26 = sbr.rel (0) target = $region9
    $region8: #{tpu_custom_call.1} parent=1 // pred_region
      _
    $region9: #{tpu_custom_call.1} parent=1 // pred_fallthru
      _
    // Predicated region
    $region10: #{tpu_custom_call.1} parent=1 // pred_check
      _
    $region11: #{tpu_custom_call.1} parent=1 // pred_check_branch
      %28 = sbr.rel (0) target = $region13
    $region12: #{tpu_custom_call.1} parent=1 // pred_region
      _
    $region13: #{tpu_custom_call.1} parent=1 // pred_fallthru
      _
    // Predicated region
    $region14: #{tpu_custom_call.1} parent=1 // pred_check
      _
    $region15: #{tpu_custom_call.1} parent=1 // pred_check_branch
      %30 = sbr.rel (0) target = $region17
    $region16: #{tpu_custom_call.1} parent=1 // pred_region
      %s32 = ssub.s32 512, 512
      %33 = vsyncadd [#allocation7], %s32
      %s34 = sshll.u32 [#allocation6], 4
      %s35 = int_to_ptr.vmem [resolvable:$true] %s34
      %40 = dma.hbm_to_vmem [thread:$0]  %s3, 512, %s35, [#allocation7], 128, 128, 8
    $region17: #{tpu_custom_call.1} parent=1 // pred_fallthru
      _
    // Predicated region
    $region18: #{tpu_custom_call.1} parent=1 // pred_check
      _
    $region19: #{tpu_custom_call.1} parent=1 // pred_check_branch
      %42 = sbr.rel (0) target = $region21
    $region20: #{tpu_custom_call.1} parent=1 // pred_region
      _
    $region21: #{tpu_custom_call.1} parent=1 // pred_fallthru
      _
    // Predicated region
    $region22: #{tpu_custom_call.1} parent=1 // pred_check
      _
    $region23: #{tpu_custom_call.1} parent=1 // pred_check_branch
      %44 = sbr.rel (0) target = $region25
    $region24: #{tpu_custom_call.1} parent=1 // pred_region
      %45 = dma.done [#allocation4], 256
    $region25: #{tpu_custom_call.1} parent=1 // pred_fallthru
      _
    // Predicated region
    $region26: #{tpu_custom_call.1} parent=1 // pred_check
      _
    $region27: #{tpu_custom_call.1} parent=1 // pred_check_branch
      %47 = sbr.rel (0) target = $region29
    $region28: #{tpu_custom_call.1} parent=1 // pred_region
      %48 = dma.done [#allocation7], 512
    $region29: #{tpu_custom_call.1} parent=1 // pred_fallthru
      _
    %p49 = scmp.eq.s32.totalorder 0, 0
    // Predicated region
    $region30: #{tpu_custom_call.1} parent=1 // pred_check
      %p50 = pneg %p49
    $region31: #{tpu_custom_call.1} parent=1 // pred_check_branch
      %52 = sbr.rel (%p50) target = $region33
    $region32: #{tpu_custom_call.1} parent=1 // pred_region
      %v53 = vld [vmem:[#allocation3] sm:$0xff]
      %v54 = vld [vmem:[#allocation3 + $0x8] sm:$0xff]
      %vm55 = vcmask 261120
      %v56 = vsel %vm55, %v53, 0.0
      %57 = vadd.xlane.f32.xlu0 %v56
      %v58 = vpop.xlane.xlu0 %57
      %v59 = vsel %vm55, %v54, 0.0
      %60 = vadd.xlane.f32.xlu0 %v59
      %v61 = vpop.xlane.xlu0 %60
      %v62 = vmul.f32 %v58, 0.03125
      %v63 = vmul.f32 %v61, 0.03125
      %v64 = vsub.f32 %v53, %v62
      %v65 = vsub.f32 %v54, %v63
      %v66 = vmul.f32 %v64, %v64
      %v67 = vmul.f32 %v65, %v65
      %v68 = vsel %vm55, %v66, 0.0
      %69 = vadd.xlane.f32.xlu0 %v68
      %v70 = vpop.xlane.xlu0 %69
      %v71 = vsel %vm55, %v67, 0.0
      %72 = vadd.xlane.f32.xlu0 %v71
      %v73 = vpop.xlane.xlu0 %72
      %v74 = vmul.f32 %v70, 0.03125
      %v75 = vmul.f32 %v73, 0.03125
      %v76 = vadd.f32 %v74, 1e-05
      %v77 = vadd.f32 %v75, 1e-05
      %v78 = vrsqrt.pop %v76
      %v79 = vrsqrt.pop %v77
      %v80 = vmul.f32 %v64, %v78
      %v81 = vmul.f32 %v65, %v79
      %v82 = vld [vmem:[%s1] sm:$0x1]
      %v84 = vlaneseq
      %v85 = vshrl.u32 %v84, 7
      %v86 = vsub.s32 0, %v85
      %v87 = vrot.slane %v82, %v86
      %v89 = vmul.f32 %v80, %v87
      %v90 = vmul.f32 %v81, %v87
      %v91 = vld [vmem:[%s2] sm:$0x1]
      %v93 = vlaneseq
      %v94 = vshrl.u32 %v93, 7
      %v95 = vsub.s32 0, %v94
      %v96 = vrot.slane %v91, %v95
      %v98 = vadd.f32 %v89, %v96
      %v99 = vadd.f32 %v90, %v96
      %100 = vst.msk [vmem:[#allocation2] sm:$0xff] %vm55, %v98
      %101 = vst.msk [vmem:[#allocation2 + $0x8] sm:$0xff] %vm55, %v99
    $region33: #{tpu_custom_call.1} parent=1 // pred_fallthru
      _
    %v102 = vld [vmem:[#allocation2] sm:$0xff]
    %v103 = vld [vmem:[#allocation2 + $0x8] sm:$0xff]
    %v104 = vld [vmem:[#allocation6] sm:$0xff]
    %v105 = vld [vmem:[#allocation6 + $0x8] sm:$0xff]
    %v106 = vld [vmem:[#allocation6 + $0x10] sm:$0xff]
    %v107 = vld [vmem:[#allocation6 + $0x18] sm:$0xff]
    %v108 = vld [vmem:[%s4] sm:$0x1]
    %v110 = vlaneseq
    %v111 = vshrl.u32 %v110, 7
    %v112 = vsub.s32 0, %v111
    %v113 = vrot.slane %v108, %v112
    %vm115 = vcmask 261120
    %v117 = vsel %vm115, %v102, 0
    %v120 = vsel %vm115, %v103, 0
    %122 = vmatprep.subr.mxu0 0.0
    %123 = vmatpush1.msra.mxu0 %v104
    %124 = vmatprep.subr.mxu0 0.0
    %125 = vmatpush1.msra.mxu0 %v105
    %126 = vmatprep.subr.mxu0 0.0
    %127 = vmatpush1.msra.mxu0 %v106
    %128 = vmatprep.subr.mxu0 0.0
    %129 = vmatpush1.msra.mxu0 %v107
    %130 = vmatprep.subr.mxu0 0.0
    %131 = vmatpush1.msra.mxu0 0.0
    %132 = vmatprep.subr.mxu0 0.0
    %133 = vmatpush1.msra.mxu0 0.0
    %134 = vmatprep.subr.mxu0 0.0
    %135 = vmatpush1.msra.mxu0 0.0
    %136 = vmatprep.subr.mxu0 0.0
    %137 = vmatpush1.msra.mxu0 0.0
    %138 = vmatprep.subr.mxu0 0.0
    %139 = vmatpush1.msra.mxu0 0.0
    %140 = vmatprep.subr.mxu0 0.0
    %141 = vmatpush1.msra.mxu0 0.0
    %142 = vmatprep.subr.mxu0 0.0
    %143 = vmatpush1.msra.mxu0 0.0
    %144 = vmatprep.subr.mxu0 0.0
    %145 = vmatpush1.msra.mxu0 0.0
    %146 = vmatprep.subr.mxu0 0.0
    %147 = vmatpush1.msra.mxu0 0.0
    %148 = vmatprep.subr.mxu0 0.0
    %149 = vmatpush1.msra.mxu0 0.0
    %150 = vmatprep.subr.mxu0 0.0
    %151 = vmatpush1.msra.mxu0 0.0
    %152 = vmatprep.subr.mxu0 0.0
    %153 = vmatpush1.msra.mxu0 0.0
    %154 = vmatprep.subr.mxu0 0.0
    %155 = vmatpush1.msra.mxu0 0.0
    %156 = vmatprep.subr.mxu0 0.0
    %157 = vmatpush1.msra.mxu0 0.0
    %158 = vmatprep.subr.mxu0 0.0
    %159 = vmatpush1.msra.mxu0 0.0
    %160 = vmatprep.subr.mxu0 0.0
    %161 = vmatpush1.msra.mxu0 0.0
    %162 = vmatprep.subr.mxu0 0.0
    %163 = vmatpush1.msra.mxu0 0.0
    %164 = vmatprep.subr.mxu0 0.0
    %165 = vmatpush1.msra.mxu0 0.0
    %166 = vmatprep.subr.mxu0 0.0
    %167 = vmatpush1.msra.mxu0 0.0
    %168 = vmatprep.subr.mxu0 0.0
    %169 = vmatpush1.msra.mxu0 0.0
    %170 = vmatprep.subr.mxu0 0.0
    %171 = vmatpush1.msra.mxu0 0.0
    %172 = vmatprep.subr.mxu0 0.0
    %173 = vmatpush1.msra.mxu0 0.0
    %174 = vmatprep.subr.mxu0 0.0
    %175 = vmatpush1.msra.mxu0 0.0
    %176 = vmatprep.subr.mxu0 0.0
    %177 = vmatpush1.msra.mxu0 0.0
    %178 = vmatprep.subr.mxu0 0.0
    %179 = vmatpush1.msra.mxu0 0.0
    %180 = vmatprep.subr.mxu0 0.0
    %181 = vmatpush1.msra.mxu0 0.0
    %182 = vmatprep.subr.mxu0 0.0
    %183 = vmatpush1.msra.mxu0 0.0
    %184 = vmatprep.subr.mxu0 0.0
    %185 = vmatpush1.msra.mxu0 0.0
    %186 = vmatprep.mubr.f32.mxu0 0.0
    %187 = vmatmul.mubr.f32.gmra.mrb[0].mxu0 %v117
    %v188 = vpop.f32.mrb[0].mxu0
    %v189 = vadd.f32 %v113, %v188
    %v190 = vpop.f32.mrb[0].mxu0
    %191 = vmatprep.mubr.f32.mxu0 0.0
    %192 = vmatmul.mubr.f32.gmra.mrb[0].mxu0 %v120
    %v193 = vpop.f32.mrb[0].mxu0
    %v194 = vadd.f32 %v113, %v193
    %v195 = vpop.f32.mrb[0].mxu0
    %196 = vdwg.mxu0
    %197 = vst [vmem:[#allocation8] sm:$0xff] %v189
    %198 = vst [vmem:[#allocation8 + $0x8] sm:$0xff] %v194
    // Predicated region
    $region34: #{tpu_custom_call.1} parent=1 // pred_check
      _
    $region35: #{tpu_custom_call.1} parent=1 // pred_check_branch
      %200 = sbr.rel (0) target = $region37
    $region36: #{tpu_custom_call.1} parent=1 // pred_region
      %s202 = ssub.s32 256, 256
      %203 = vsyncadd [#allocation5], %s202
      %s204 = sshll.u32 [#allocation8], 4
      %s205 = int_to_ptr.vmem [resolvable:$true] %s204
      %210 = dma.vmem_to_hbm [thread:$0]  %s205, 256, %s5, [#allocation5], 128, 128, 8
    $region37: #{tpu_custom_call.1} parent=1 // pred_fallthru
      _
    // Predicated region
    $region38: #{tpu_custom_call.1} parent=1 // pred_check
      _
    $region39: #{tpu_custom_call.1} parent=1 // pred_check_branch
      %212 = sbr.rel (0) target = $region41
    $region40: #{tpu_custom_call.1} parent=1 // pred_region
      %213 = dma.done [#allocation5], 256
    $region41: #{tpu_custom_call.1} parent=1 // pred_fallthru
      _
    %214 = vsyncpa [#allocation4], 1
    %215 = vsyncpa [#allocation7], 1
    %216 = vsyncpa [#allocation5], 1

</llo_original>
